<compile_context>
chip_gen: v5e
topology: v5e:2x2
jax: 0.10.0
libtpu: 0.0.40
codegen_flags: <defaults>
</compile_context>

<pallas_src>
import jax
import jax.numpy as jnp
from jax.experimental import pallas as pl
from jax.experimental.pallas import tpu as pltpu

_LANES = 128


def _round_up(x, m):
    return ((x + m - 1) // m) * m


def _vmem_capacity_bytes():
    """Best-effort per-core VMEM capacity; conservative default if unknown."""
    try:
        info = pltpu.get_tpu_info()
        cap = int(getattr(info, "vmem_capacity_bytes", 0))
        if cap > 0:
            return cap
    except Exception:
        pass
    return 64 << 20  # v7x per-TensorCore VMEM (most restrictive)


# ------------------------------- kernels ----------------------------------- #

def _fused_kernel(x_ref, w0_ref, b0_ref, w1_ref, b1_ref, o_ref):
    """Fast path: both weight matrices VMEM-resident, one batch tile per step."""
    # fc_layer_0 on the MXU with f32 accumulation.
    h = jnp.dot(x_ref[...], w0_ref[...], preferred_element_type=jnp.float32)
    # bias + tanh in f32 (VPU/EUP; v5e has no bf16 elementwise path).
    h = jnp.tanh(h + b0_ref[...])
    # dropout: identity in eval/inference mode.
    # TODO(synk): training-mode dropout (pltpu.prng_seed + prng_random_bits) not implemented.
    logits = jnp.dot(h.astype(w1_ref.dtype), w1_ref[...],
                     preferred_element_type=jnp.float32)
    o_ref[...] = (logits + b1_ref[...]).astype(o_ref.dtype)


def _ktiled_kernel(x_ref, w0_ref, b0_ref, w1_ref, b1_ref, o_ref, acc_ref):
    """Fallback: feature (K) axis tiled so W0 never has to be fully resident."""
    k = pl.program_id(1)

    @pl.when(k == 0)
    def _():
        acc_ref[...] = jnp.zeros_like(acc_ref)

    acc_ref[...] += jnp.dot(x_ref[...], w0_ref[...],
                            preferred_element_type=jnp.float32)

    @pl.when(k == pl.num_programs(1) - 1)
    def _():
        h = jnp.tanh(acc_ref[...] + b0_ref[...])
        # dropout: identity in eval/inference mode.
        logits = jnp.dot(h.astype(w1_ref.dtype), w1_ref[...],
                         preferred_element_type=jnp.float32)
        o_ref[...] = (logits + b1_ref[...]).astype(o_ref.dtype)


# ------------------------------- wrapper ----------------------------------- #

def classifier_forward(features, w0, b0, w1, b1, *, block_b=None, block_f=None,
                       compute_dtype=jnp.bfloat16, out_dtype=jnp.float32,
                       force_k_tiling=False):
    """features: [B, F] -> logits: [B, num_labels] (out_dtype, default f32)."""
    B, F = features.shape
    H = w0.shape[1]
    L = w1.shape[1]

    b0 = jnp.asarray(b0, jnp.float32).reshape(1, -1)
    b1 = jnp.asarray(b1, jnp.float32).reshape(1, -1)

    # Lane-dense padding: hidden and label dims to multiples of 128 lanes
    # (unmasked vst output, full MXU tiles).  Zero padding is exact: padded
    # hidden columns see tanh(0)=0 and multiply zero rows of W1.
    Hp = _round_up(max(H, _LANES), _LANES)
    Lp = _round_up(max(L, _LANES), _LANES)
    if Hp != H:
        w0 = jnp.pad(w0, ((0, 0), (0, Hp - H)))
        b0 = jnp.pad(b0, ((0, 0), (0, Hp - H)))
        w1 = jnp.pad(w1, ((0, Hp - H), (0, 0)))
    if Lp != L:
        w1 = jnp.pad(w1, ((0, 0), (0, Lp - L)))
        b1 = jnp.pad(b1, ((0, 0), (0, Lp - L)))

    # bf16 streaming by default (MXU-native everywhere; ~2x less HBM traffic,
    # avoids multi-pass f32 MXU lowering).  f32 accumulation is preserved.
    # Pass compute_dtype=jnp.float32 if exact f32 parity is required.
    if compute_dtype is not None:
        features = features.astype(compute_dtype)
        w0 = w0.astype(compute_dtype)
        w1 = w1.astype(compute_dtype)

    in_bytes = jnp.dtype(features.dtype).itemsize
    out_bytes = jnp.dtype(out_dtype).itemsize
    row_mult = 8 if in_bytes >= 4 else 16  # sublane packing granularity

    # Batch tiling: big VMEM-sized tiles, but aim for >= 2 grid steps so the
    # "parallel" batch axis can shard across v7x's two TensorCores.
    if block_b is None:
        cap = 512 if in_bytes >= 4 else 1024
        if B > row_mult:
            block_b = min(cap, _round_up(-(-B // 2), row_mult))
        else:
            block_b = _round_up(B, row_mult)
    else:
        block_b = _round_up(block_b, row_mult)
    block_b = max(block_b, row_mult)
    Bp = _round_up(B, block_b)
    if Bp != B:
        features = jnp.pad(features, ((0, Bp - B), (0, 0)))

    # Per-generation VMEM budget.
    vmem_cap = _vmem_capacity_bytes()
    usable_vmem = max(32 << 20, min(vmem_cap, 128 << 20) - (8 << 20))
    slack = 4 << 20

    resident_bytes = (
        2 * block_b * F * in_bytes            # x stream (double buffered)
        + 2 * block_b * Lp * out_bytes        # logits stream (double buffered)
        + 2 * (F * Hp + Hp * Lp) * in_bytes   # weights (pipeline double-buffers)
        + 2 * (Hp + Lp) * 4                   # biases
        + 2 * block_b * max(Hp, Lp) * 4       # f32 intermediates headroom
    )
    use_k_tiling = force_k_tiling or (resident_bytes + slack > usable_vmem)

    if not use_k_tiling:
        vmem_limit = int(min(max(resident_bytes + slack, 32 << 20), usable_vmem))
        grid = (Bp // block_b,)
        out = pl.pallas_call(
            _fused_kernel,
            out_shape=jax.ShapeDtypeStruct((Bp, Lp), out_dtype),
            grid_spec=pltpu.PrefetchScalarGridSpec(
                num_scalar_prefetch=0,
                grid=grid,
                in_specs=[
                    pl.BlockSpec((block_b, F), lambda i: (i, 0)),   # x: streamed
                    pl.BlockSpec((F, Hp), lambda i: (0, 0)),        # w0: resident
                    pl.BlockSpec((1, Hp), lambda i: (0, 0)),        # b0: resident
                    pl.BlockSpec((Hp, Lp), lambda i: (0, 0)),       # w1: resident
                    pl.BlockSpec((1, Lp), lambda i: (0, 0)),        # b1: resident
                ],
                out_specs=pl.BlockSpec((block_b, Lp), lambda i: (i, 0)),
            ),
            compiler_params=pltpu.CompilerParams(
                dimension_semantics=("parallel",),  # megacore on v7x
                vmem_limit_bytes=vmem_limit,
            ),
            cost_estimate=pl.CostEstimate(
                flops=2 * Bp * (F * Hp + Hp * Lp),
                transcendentals=Bp * Hp,
                bytes_accessed=(Bp * F * in_bytes + Bp * Lp * out_bytes
                                + (F * Hp + Hp * Lp) * in_bytes
                                + (Hp + Lp) * 4)),
        )(features, w0, b0, w1, b1)
    else:
        # K-tiling fallback (v7x / large F*H): stream W0 along the feature axis,
        # accumulate the pre-activation in an f32 VMEM scratch, finalize with
        # bias+tanh+second matmul on the last K step.
        if block_f is None:
            block_f = min(512, _round_up(F, _LANES))
        block_f = _round_up(block_f, _LANES)
        Fp = _round_up(F, block_f)
        if Fp != F:
            features = jnp.pad(features, ((0, 0), (0, Fp - F)))
            w0 = jnp.pad(w0, ((0, Fp - F), (0, 0)))
        nb, nk = Bp // block_b, Fp // block_f

        ktile_bytes = (
            2 * block_b * block_f * in_bytes   # x stream
            + 2 * block_f * Hp * in_bytes      # w0 stream
            + 2 * block_b * Lp * out_bytes     # logits stream
            + 2 * Hp * Lp * in_bytes           # w1 resident
            + 2 * (Hp + Lp) * 4                # biases
            + block_b * Hp * 4                 # f32 accumulator scratch
            + 2 * block_b * max(Hp, Lp) * 4    # intermediates headroom
        )
        # TODO(synk): if Hp*Lp alone exceeds the VMEM budget, also tile the Hp
        # axis of W1 (second-level K tiling) — not needed for these shapes.
        vmem_limit = int(min(max(ktile_bytes + slack, 32 << 20), usable_vmem))

        out = pl.pallas_call(
            _ktiled_kernel,
            out_shape=jax.ShapeDtypeStruct((Bp, Lp), out_dtype),
            grid_spec=pltpu.PrefetchScalarGridSpec(
                num_scalar_prefetch=0,
                grid=(nb, nk),
                in_specs=[
                    pl.BlockSpec((block_b, block_f), lambda i, k: (i, k)),  # x
                    pl.BlockSpec((block_f, Hp), lambda i, k: (k, 0)),       # w0
                    pl.BlockSpec((1, Hp), lambda i, k: (0, 0)),             # b0
                    pl.BlockSpec((Hp, Lp), lambda i, k: (0, 0)),            # w1
                    pl.BlockSpec((1, Lp), lambda i, k: (0, 0)),             # b1
                ],
                out_specs=pl.BlockSpec((block_b, Lp), lambda i, k: (i, 0)),
                scratch_shapes=[pltpu.VMEM((block_b, Hp), jnp.float32)],
            ),
            compiler_params=pltpu.CompilerParams(
                dimension_semantics=("parallel", "arbitrary"),
                vmem_limit_bytes=vmem_limit,
            ),
            cost_estimate=pl.CostEstimate(
                flops=2 * Bp * (Fp * Hp + Hp * Lp),
                transcendentals=Bp * Hp,
                bytes_accessed=(Bp * Fp * in_bytes
                                + nb * Fp * Hp * in_bytes
                                + Bp * Lp * out_bytes
                                + Hp * Lp * in_bytes + (Hp + Lp) * 4)),
        )(features, w0, b0, w1, b1)

    if Bp != B or Lp != L:
        out = out[:B, :L]
    return out


def init_params(key, feature_size, hidden_size, num_labels, dtype=jnp.float32):
    """Deterministic synthetic parameters (nn.Linear weights stored transposed)."""
    k0, k1, k2, k3 = jax.random.split(key, 4)
    w0 = jax.random.normal(k0, (feature_size, hidden_size), dtype) * 0.05
    b0 = jax.random.normal(k1, (1, hidden_size), dtype) * 0.05
    w1 = jax.random.normal(k2, (hidden_size, num_labels), dtype) * 0.05
    b1 = jax.random.normal(k3, (1, num_labels), dtype) * 0.05
    return w0, b0, w1, b1


if __name__ == "__main__":
    # Small shapes consistent with the module's forward.
    batch_size, feature_size, hidden_size, num_labels = 8, 32, 32, 8
    dropout_prob = 0.1  # unused at inference (eval-mode identity)

    key = jax.random.PRNGKey(0)
    k_x, k_p, k_x2, k_x3, k_p3 = jax.random.split(key, 5)
    features = jax.random.normal(k_x, (batch_size, feature_size), jnp.float32)
    w0, b0, w1, b1 = init_params(k_p, feature_size, hidden_size, num_labels)

    # Reference in plain JAX (eval-mode dropout == identity).
    ref = jnp.tanh(features @ w0 + b0) @ w1 + b1

    # 1) f32-parity path.
    logits_f32 = jax.block_until_ready(
        classifier_forward(features, w0, b0, w1, b1, compute_dtype=jnp.float32))
    assert logits_f32.shape == (batch_size, num_labels)
    assert jnp.allclose(logits_f32, ref, atol=1e-5, rtol=1e-5)

    # 2) default bf16-streaming path (f32 MXU accumulation), looser tolerance.
    logits_bf16 = jax.block_until_ready(
        classifier_forward(features, w0, b0, w1, b1))
    assert logits_bf16.shape == (batch_size, num_labels)
    assert jnp.allclose(logits_bf16, ref, atol=5e-2, rtol=5e-2)

    # 3) non-divisible batch: exercises batch padding + multi-step grid pipeline.
    features2 = jax.random.normal(k_x2, (20, feature_size), jnp.float32)
    ref2 = jnp.tanh(features2 @ w0 + b0) @ w1 + b1
    logits2 = jax.block_until_ready(
        classifier_forward(features2, w0, b0, w1, b1, block_b=8,
                           compute_dtype=jnp.float32))
    assert logits2.shape == (20, num_labels)
    assert jnp.allclose(logits2, ref2, atol=1e-5, rtol=1e-5)

    # 4) K(feature)-tiled fallback (used automatically when weights exceed the
    #    VMEM budget; forced here on small shapes so the path is exercised).
    B3, F3, H3, L3 = 64, 256, 64, 10
    features3 = jax.random.normal(k_x3, (B3, F3), jnp.float32)
    w0_3, b0_3, w1_3, b1_3 = init_params(k_p3, F3, H3, L3)
    ref3 = jnp.tanh(features3 @ w0_3 + b0_3) @ w1_3 + b1_3
    logits3 = jax.block_until_ready(
        classifier_forward(features3, w0_3, b0_3, w1_3, b1_3,
                           compute_dtype=jnp.float32, force_k_tiling=True,
                           block_f=128))
    assert logits3.shape == (B3, L3)
    assert jnp.allclose(logits3, ref3, atol=1e-4, rtol=1e-4)

    print("KERNEL_OK")
</pallas_src>

<mosaic_0001>
module attributes {stable_mosaic.version = 11 : i64} {
  func.func @_fused_kernel(%arg0: i32, %arg1: memref<8x32xf32, #tpu.memory_space<vmem>>, %arg2: memref<32x128xf32, #tpu.memory_space<vmem>>, %arg3: memref<1x128xf32, #tpu.memory_space<vmem>>, %arg4: memref<128x128xf32, #tpu.memory_space<vmem>>, %arg5: memref<1x128xf32, #tpu.memory_space<vmem>>, %arg6: memref<8x128xf32, #tpu.memory_space<vmem>>) attributes {dimension_semantics = [#tpu.dimension_semantics<parallel>], iteration_bounds = array<i64: 1>, scalar_prefetch = 0 : i64, scratch_operands = 0 : i64, tpu.core_type = #tpu.core_type<tc>, window_params = [{transform_indices = @transform_0, window_bounds = array<i64: 8, 32>}, {pipeline_mode = #tpu.pipeline_mode<synchronous>, transform_indices = @transform_1, window_bounds = array<i64: 32, 128>}, {pipeline_mode = #tpu.pipeline_mode<synchronous>, transform_indices = @transform_2, window_bounds = array<i64: 1, 128>}, {pipeline_mode = #tpu.pipeline_mode<synchronous>, transform_indices = @transform_3, window_bounds = array<i64: 128, 128>}, {pipeline_mode = #tpu.pipeline_mode<synchronous>, transform_indices = @transform_4, window_bounds = array<i64: 1, 128>}, {transform_indices = @transform_5, window_bounds = array<i64: 8, 128>}]} {
    %c0 = arith.constant 0 : index
    %c0_0 = arith.constant 0 : index
    %0 = vector.load %arg1[%c0, %c0_0] : memref<8x32xf32, #tpu.memory_space<vmem>>, vector<8x32xf32>
    %c0_1 = arith.constant 0 : index
    %c0_2 = arith.constant 0 : index
    %1 = vector.load %arg2[%c0_1, %c0_2] : memref<32x128xf32, #tpu.memory_space<vmem>>, vector<32x128xf32>
    %cst = arith.constant dense<0.000000e+00> : vector<8x128xf32>
    %2 = tpu.matmul %0, %1, %cst {dimension_numbers = #tpu.dot_dimension_numbers<[1], [0], [0], [1], [0, 0, 1, 1], [], []>} : vector<8x32xf32>, vector<32x128xf32>, vector<8x128xf32> -> vector<8x128xf32>
    %c0_3 = arith.constant 0 : index
    %c0_4 = arith.constant 0 : index
    %3 = vector.load %arg3[%c0_3, %c0_4] : memref<1x128xf32, #tpu.memory_space<vmem>>, vector<1x128xf32>
    %4 = vector.broadcast %3 : vector<1x128xf32> to vector<8x128xf32>
    %5 = arith.addf %2, %4 : vector<8x128xf32>
    %6 = math.tanh %5 : vector<8x128xf32>
    %c0_5 = arith.constant 0 : index
    %c0_6 = arith.constant 0 : index
    %7 = vector.load %arg4[%c0_5, %c0_6] : memref<128x128xf32, #tpu.memory_space<vmem>>, vector<128x128xf32>
    %cst_7 = arith.constant dense<0.000000e+00> : vector<8x128xf32>
    %8 = tpu.matmul %6, %7, %cst_7 {dimension_numbers = #tpu.dot_dimension_numbers<[1], [0], [0], [1], [0, 0, 1, 1], [], []>} : vector<8x128xf32>, vector<128x128xf32>, vector<8x128xf32> -> vector<8x128xf32>
    %c0_8 = arith.constant 0 : index
    %c0_9 = arith.constant 0 : index
    %9 = vector.load %arg5[%c0_8, %c0_9] : memref<1x128xf32, #tpu.memory_space<vmem>>, vector<1x128xf32>
    %10 = vector.broadcast %9 : vector<1x128xf32> to vector<8x128xf32>
    %11 = arith.addf %8, %10 : vector<8x128xf32>
    %c0_10 = arith.constant 0 : index
    %c0_11 = arith.constant 0 : index
    %12 = vector.load %arg6[%c0_10, %c0_11] : memref<8x128xf32, #tpu.memory_space<vmem>>, vector<8x128xf32>
    tpu.vector_store %arg6[%c0_10, %c0_11], %11 {strides = array<i32>} : memref<8x128xf32, #tpu.memory_space<vmem>>, vector<8x128xf32>,
    return
  }
  func.func @transform_0(%arg0: i32) -> (i32, i32) {
    %c0_i32 = arith.constant 0 : i32
    %c0_i32_0 = arith.constant 0 : i32
    return %arg0, %c0_i32 : i32, i32
  }
  func.func @transform_1(%arg0: i32) -> (i32, i32) {
    %c0_i32 = arith.constant 0 : i32
    %c0_i32_0 = arith.constant 0 : i32
    %c0_i32_1 = arith.constant 0 : i32
    return %c0_i32, %c0_i32_0 : i32, i32
  }
  func.func @transform_2(%arg0: i32) -> (i32, i32) {
    %c0_i32 = arith.constant 0 : i32
    %c0_i32_0 = arith.constant 0 : i32
    %c0_i32_1 = arith.constant 0 : i32
    return %c0_i32, %c0_i32_0 : i32, i32
  }
  func.func @transform_3(%arg0: i32) -> (i32, i32) {
    %c0_i32 = arith.constant 0 : i32
    %c0_i32_0 = arith.constant 0 : i32
    %c0_i32_1 = arith.constant 0 : i32
    return %c0_i32, %c0_i32_0 : i32, i32
  }
  func.func @transform_4(%arg0: i32) -> (i32, i32) {
    %c0_i32 = arith.constant 0 : i32
    %c0_i32_0 = arith.constant 0 : i32
    %c0_i32_1 = arith.constant 0 : i32
    return %c0_i32, %c0_i32_0 : i32, i32
  }
  func.func @transform_5(%arg0: i32) -> (i32, i32) {
    %c0_i32 = arith.constant 0 : i32
    %c0_i32_0 = arith.constant 0 : i32
    return %arg0, %c0_i32 : i32, i32
  }
}

</mosaic_0001>

<llo_original>
// kernel: tpu_custom_call.1
$region0: #{tpu_custom_call.1}
  #allocation0 [shape = 'u32[]', space=smem, size = 0x4, offset = 0x4, fixed_abs, tag = 'smem constant byte address 0x4 - core index']
  #allocation1 [shape = 'u32[72,128]{1,0:T(1,128)}', space=vmem, size = 0x9000, scoped, tag = 'internal scratch']
  %s0 = inlined_call_operand.hbm [shape: f32[8,32], index: 0, kind: input, shape index: {}]
  %s1 = inlined_call_operand.hbm [shape: f32[32,128], index: 1, kind: input, shape index: {}]
  %s2 = inlined_call_operand.vmem [shape: f32[1,128], index: 2, kind: input, shape index: {}]
  %s3 = inlined_call_operand.hbm [shape: f32[128,128], index: 3, kind: input, shape index: {}]
  %s4 = inlined_call_operand.vmem [shape: f32[1,128], index: 4, kind: input, shape index: {}]
  %s5 = inlined_call_operand.hbm [shape: f32[8,128], index: 5, kind: output, shape index: {}]
  %s6 = sld [smem:[#allocation0]]
  $region42: #{tpu_custom_call.1} parent=0
    _
  %s8 = ssub.s32 1, %s6
  %s9 = scalar_select 0, %s8, %s6
  $region1: #{tpu_custom_call.1} parent=0
    #allocation2 [shape = 'u8[4096]{0}', space=vmem, size = 0x1000, scoped, tag = 'input window, operand 0, single buffered']
    #allocation3 [shape = 's32[1]{0}', space=sflag, size = 0x4, scoped, tag = 'scoped memory for tpu_custom_call.1']
    #allocation4 [shape = 's32[1]{0}', space=sflag, size = 0x4, scoped, tag = 'scoped memory for tpu_custom_call.1']
    #allocation5 [shape = 'u8[16384]{0}', space=vmem, size = 0x4000, scoped, tag = 'input window, operand 1, single buffered']
    #allocation6 [shape = 's32[1]{0}', space=sflag, size = 0x4, scoped, tag = 'scoped memory for tpu_custom_call.1']
    #allocation7 [shape = 'u8[65536]{0}', space=vmem, size = 0x10000, scoped, tag = 'input window, operand 3, single buffered']
    #allocation8 [shape = 'u8[4096]{0}', space=vmem, size = 0x1000, scoped, tag = 'output window, operand 0, single buffered']
    %10 = vsyncpa [#allocation3], 0
    %11 = vsyncpa [#allocation6], 0
    %12 = vsyncpa [#allocation4], 0
    // Predicated region
    $region2: #{tpu_custom_call.1} parent=1 // pred_check
      _
    $region3: #{tpu_custom_call.1} parent=1 // pred_check_branch
      %14 = sbr.rel (0) target = $region5
    $region4: #{tpu_custom_call.1} parent=1 // pred_region
      %16 = vsyncadd [#allocation3], 0
      %s18 = sshll.u32 %s0, 4
      %s19 = int_to_ptr.hbm [resolvable:$true] %s18
      %s20 = sshll.u32 [#allocation2], 4
      %s21 = int_to_ptr.vmem [resolvable:$true] %s20
      %23 = dma.hbm_to_vmem [thread:$0]  %s19, 128, %s21, [#allocation3]
    $region5: #{tpu_custom_call.1} parent=1 // pred_fallthru
      _
    // Predicated region
    $region6: #{tpu_custom_call.1} parent=1 // pred_check
      _
    $region7: #{tpu_custom_call.1} parent=1 // pred_check_branch
      %25 = sbr.rel (0) target = $region9
    $region8: #{tpu_custom_call.1} parent=1 // pred_region
      %27 = vsyncadd [#allocation6], 0
      %s28 = sshll.u32 %s1, 4
      %s29 = int_to_ptr.hbm [resolvable:$true] %s28
      %s30 = sshll.u32 [#allocation5], 4
      %s31 = int_to_ptr.vmem [resolvable:$true] %s30
      %36 = dma.hbm_to_vmem [thread:$0]  %s29, 512, %s31, [#allocation6], 128, 128, 8
    $region9: #{tpu_custom_call.1} parent=1 // pred_fallthru
      _
    // Predicated region
    $region10: #{tpu_custom_call.1} parent=1 // pred_check
      _
    $region11: #{tpu_custom_call.1} parent=1 // pred_check_branch
      %38 = sbr.rel (0) target = $region13
    $region12: #{tpu_custom_call.1} parent=1 // pred_region
      _
    $region13: #{tpu_custom_call.1} parent=1 // pred_fallthru
      _
    // Predicated region
    $region14: #{tpu_custom_call.1} parent=1 // pred_check
      _
    $region15: #{tpu_custom_call.1} parent=1 // pred_check_branch
      %40 = sbr.rel (0) target = $region17
    $region16: #{tpu_custom_call.1} parent=1 // pred_region
      %42 = vsyncadd [#allocation6], 0
      %s43 = sshll.u32 %s3, 4
      %s44 = int_to_ptr.hbm [resolvable:$true] %s43
      %s45 = sshll.u32 [#allocation7], 4
      %s46 = int_to_ptr.vmem [resolvable:$true] %s45
      %51 = dma.hbm_to_vmem [thread:$0]  %s44, 2048, %s46, [#allocation6], 128, 128, 8
    $region17: #{tpu_custom_call.1} parent=1 // pred_fallthru
      _
    // Predicated region
    $region18: #{tpu_custom_call.1} parent=1 // pred_check
      _
    $region19: #{tpu_custom_call.1} parent=1 // pred_check_branch
      %53 = sbr.rel (0) target = $region21
    $region20: #{tpu_custom_call.1} parent=1 // pred_region
      _
    $region21: #{tpu_custom_call.1} parent=1 // pred_fallthru
      _
    // Predicated region
    $region22: #{tpu_custom_call.1} parent=1 // pred_check
      _
    $region23: #{tpu_custom_call.1} parent=1 // pred_check_branch
      %55 = sbr.rel (0) target = $region25
    $region24: #{tpu_custom_call.1} parent=1 // pred_region
      %57 = dma.done [#allocation3], 128
    $region25: #{tpu_custom_call.1} parent=1 // pred_fallthru
      _
    // Predicated region
    $region26: #{tpu_custom_call.1} parent=1 // pred_check
      _
    $region27: #{tpu_custom_call.1} parent=1 // pred_check_branch
      %59 = sbr.rel (0) target = $region29
    $region28: #{tpu_custom_call.1} parent=1 // pred_region
      %61 = dma.done [#allocation6], 512
    $region29: #{tpu_custom_call.1} parent=1 // pred_fallthru
      _
    // Predicated region
    $region30: #{tpu_custom_call.1} parent=1 // pred_check
      _
    $region31: #{tpu_custom_call.1} parent=1 // pred_check_branch
      %63 = sbr.rel (0) target = $region33
    $region32: #{tpu_custom_call.1} parent=1 // pred_region
      %65 = dma.done [#allocation6], 2048
    $region33: #{tpu_custom_call.1} parent=1 // pred_fallthru
      _
    %v66 = vld [vmem:[#allocation2] sm:$0xff]
    %v67 = vld [vmem:[#allocation5] sm:$0xff]
    %v68 = vld [vmem:[#allocation5 + $0x8] sm:$0xff]
    %v69 = vld [vmem:[#allocation5 + $0x10] sm:$0xff]
    %v70 = vld [vmem:[#allocation5 + $0x18] sm:$0xff]
    %v71 = vld [vmem:[%s2] sm:$0x1]
    %v73 = vperm.slane %v71, 0
    %vm75 = vcmask 261120
    %v77 = vsel %vm75, %v66, 0
    %79 = vmatpush.msra.mxu0 0.0
    %80 = vmatpush.msra.mxu0 0.0
    %81 = vmatpush.msra.mxu0 0.0
    %82 = vmatpush.msra.mxu0 0.0
    %83 = vmatpush.msra.mxu0 0.0
    %84 = vmatpush.msra.mxu0 0.0
    %85 = vmatpush.msra.mxu0 0.0
    %86 = vmatpush.msra.mxu0 0.0
    %87 = vmatpush.msra.mxu0 0.0
    %88 = vmatpush.msra.mxu0 0.0
    %89 = vmatpush.msra.mxu0 0.0
    %90 = vmatpush.msra.mxu0 0.0
    %91 = vmatpush.msra.mxu0 %v70
    %92 = vmatpush.msra.mxu0 %v69
    %93 = vmatpush.msra.mxu0 %v68
    %94 = vmatpush.msra.mxu0 %v67
    %95 = vmatmul.f32.gmra.mxu0 %v77
    %v96 = vpop.f32.mrf.mxu0
    %v97 = vadd.f32 %v73, %v96
    %98 = vdwg.mxu0
    %v99 = vtanh.pop %v97
    %v100 = vld [vmem:[#allocation7] sm:$0xff]
    %v101 = vld [vmem:[#allocation7 + $0x8] sm:$0xff]
    %v102 = vld [vmem:[#allocation7 + $0x10] sm:$0xff]
    %v103 = vld [vmem:[#allocation7 + $0x18] sm:$0xff]
    %v104 = vld [vmem:[#allocation7 + $0x20] sm:$0xff]
    %v105 = vld [vmem:[#allocation7 + $0x28] sm:$0xff]
    %v106 = vld [vmem:[#allocation7 + $0x30] sm:$0xff]
    %v107 = vld [vmem:[#allocation7 + $0x38] sm:$0xff]
    %v108 = vld [vmem:[#allocation7 + $0x40] sm:$0xff]
    %v109 = vld [vmem:[#allocation7 + $0x48] sm:$0xff]
    %v110 = vld [vmem:[#allocation7 + $0x50] sm:$0xff]
    %v111 = vld [vmem:[#allocation7 + $0x58] sm:$0xff]
    %v112 = vld [vmem:[#allocation7 + $0x60] sm:$0xff]
    %v113 = vld [vmem:[#allocation7 + $0x68] sm:$0xff]
    %v114 = vld [vmem:[#allocation7 + $0x70] sm:$0xff]
    %v115 = vld [vmem:[#allocation7 + $0x78] sm:$0xff]
    %v116 = vld [vmem:[%s4] sm:$0x1]
    %v118 = vperm.slane %v116, 0
    %120 = vmatpush.msra.mxu0 %v115
    %121 = vmatpush.msra.mxu0 %v114
    %122 = vmatpush.msra.mxu0 %v113
    %123 = vmatpush.msra.mxu0 %v112
    %124 = vmatpush.msra.mxu0 %v111
    %125 = vmatpush.msra.mxu0 %v110
    %126 = vmatpush.msra.mxu0 %v109
    %127 = vmatpush.msra.mxu0 %v108
    %128 = vmatpush.msra.mxu0 %v107
    %129 = vmatpush.msra.mxu0 %v106
    %130 = vmatpush.msra.mxu0 %v105
    %131 = vmatpush.msra.mxu0 %v104
    %132 = vmatpush.msra.mxu0 %v103
    %133 = vmatpush.msra.mxu0 %v102
    %134 = vmatpush.msra.mxu0 %v101
    %135 = vmatpush.msra.mxu0 %v100
    %136 = vmatmul.f32.gmra.mxu0 %v99
    %v137 = vpop.f32.mrf.mxu0
    %v138 = vadd.f32 %v118, %v137
    %139 = vdwg.mxu0
    %140 = vst [vmem:[#allocation8] sm:$0xff] %v138
    // Predicated region
    $region34: #{tpu_custom_call.1} parent=1 // pred_check
      _
    $region35: #{tpu_custom_call.1} parent=1 // pred_check_branch
      %142 = sbr.rel (0) target = $region37
    $region36: #{tpu_custom_call.1} parent=1 // pred_region
      %144 = vsyncadd [#allocation4], 0
      %s146 = sshll.u32 [#allocation8], 4
      %s147 = int_to_ptr.vmem [resolvable:$true] %s146
      %s148 = sshll.u32 %s5, 4
      %s149 = int_to_ptr.hbm [resolvable:$true] %s148
      %151 = dma.vmem_to_hbm [thread:$0]  %s147, 128, %s149, [#allocation4]
    $region37: #{tpu_custom_call.1} parent=1 // pred_fallthru
      _
    // Predicated region
    $region38: #{tpu_custom_call.1} parent=1 // pred_check
      _
    $region39: #{tpu_custom_call.1} parent=1 // pred_check_branch
      %153 = sbr.rel (0) target = $region41
    $region40: #{tpu_custom_call.1} parent=1 // pred_region
      %155 = dma.done [#allocation4], 128
    $region41: #{tpu_custom_call.1} parent=1 // pred_fallthru
      _
    %156 = vsyncpa [#allocation3], 1
    %157 = vsyncpa [#allocation6], 1
    %158 = vsyncpa [#allocation4], 1

</llo_original>
